<compile_context>
chip_gen: v6e
topology: v6e:2x2x1
jax: 0.10.0
libtpu: 0.0.40
codegen_flags: <defaults>
</compile_context>

<pallas_src>
import jax
import jax.numpy as jnp
from jax.experimental import pallas as pl
from jax.experimental.pallas import tpu as pltpu

BN_EPS = 1e-5
LEAKY_SLOPE = 0.1  # the module constructs nn.LeakyReLU(0.1)

# Collapse the class grid axis when the bf16 W2 slab is at most this big.
_W2_RESIDENT_BYTES = 4 * 1024 * 1024


def _round_up(x, m):
    return (x + m - 1) // m * m


def _cdiv(a, b):
    return -(-a // b)


def _pad2d(a, rows, cols):
    pr, pc = rows - a.shape[0], cols - a.shape[1]
    if pr == 0 and pc == 0:
        return a
    return jnp.pad(a, ((0, pr), (0, pc)))


# ----------------------------------------------------------------------------
# Kernels
# ----------------------------------------------------------------------------
def class_block_kernel_fused(x_ref, w1_ref, b1_ref, w2_ref, b2_ref, out_ref):
    """Single grid axis over batch tiles; full class dim resident (lane-dense)."""
    h = jnp.dot(x_ref[...], w1_ref[...], preferred_element_type=jnp.float32)
    h = h + b1_ref[...]                         # folded-BN bias, f32
    h = jnp.maximum(h, LEAKY_SLOPE * h)         # LeakyReLU(0.1), f32
    out = jnp.dot(h.astype(jnp.bfloat16), w2_ref[...],
                  preferred_element_type=jnp.float32)
    out_ref[...] = (out + b2_ref[...]).astype(out_ref.dtype)


def class_block_kernel_tiled(x_ref, w1_ref, b1_ref, w2_ref, b2_ref, out_ref, h_ref):
    """Grid = (batch tile i, class tile j).  NOTE: the class axis MUST stay
    innermost and 'arbitrary' (the j==0 write / j>0 read of h_ref depends on
    sequential execution of the class axis on one core)."""
    @pl.when(pl.program_id(1) == 0)
    def _():
        h = jnp.dot(x_ref[...], w1_ref[...], preferred_element_type=jnp.float32)
        h = h + b1_ref[...]
        h_ref[...] = jnp.maximum(h, LEAKY_SLOPE * h)   # cache hidden act in f32

    out = jnp.dot(h_ref[...].astype(jnp.bfloat16), w2_ref[...],
                  preferred_element_type=jnp.float32)
    out_ref[...] = (out + b2_ref[...]).astype(out_ref.dtype)


# ----------------------------------------------------------------------------
# Wrapper
# ----------------------------------------------------------------------------
@jax.jit
def class_block_forward(x, params):
    """x: (B, input_dim) float32.  params: dict (see init_class_block_params)."""
    B, D = x.shape
    H = params["w1"].shape[1]
    C = params["w2"].shape[1]

    # ---- Fold BatchNorm1d (eval) into Linear1: w1_eff = w1*s, b1_eff = (b1-m)*s + beta
    scale = params["gamma"] * jax.lax.rsqrt(params["running_var"] + BN_EPS)  # (1, H)
    w1_eff = params["w1"] * scale                                            # (D, H)
    b1_eff = (params["b1"] - params["running_mean"]) * scale + params["beta"]

    # ---- Batch tile: <=256 rows, sublane multiple of 8, and >=2 tiles when
    #      feasible so both v7x TensorCores get work on the "parallel" axis.
    if B >= 512:
        tm = 256
    elif B > 8:
        tm = _round_up(_cdiv(B, 2), 8)
    else:
        tm = _round_up(max(B, 1), 8)

    Bp = _round_up(B, tm)
    Dp = _round_up(D, 128)
    Hp = _round_up(H, 128)
    Cp128 = _round_up(C, 128)

    collapse_class_axis = (Hp * Cp128 * 2) <= _W2_RESIDENT_BYTES

    flops = 2 * B * (D * H + H * C)

    if collapse_class_axis:
        # -------- Single grid axis: whole block fused per batch tile --------
        Cp = Cp128
        xp = _pad2d(x, Bp, Dp).astype(jnp.bfloat16)
        w1p = _pad2d(w1_eff, Dp, Hp).astype(jnp.bfloat16)
        b1p = _pad2d(b1_eff, 1, Hp).astype(jnp.float32)
        w2p = _pad2d(params["w2"], Hp, Cp).astype(jnp.bfloat16)
        b2p = _pad2d(params["b2"], 1, Cp).astype(jnp.float32)

        grid = (Bp // tm,)

        # VMEM budget (double-buffered inputs/outputs), used for vmem_limit_bytes.
        vmem_est = (2 * tm * Dp * 2 + 2 * Dp * Hp * 2 + 2 * Hp * 4
                    + 2 * Hp * Cp * 2 + 2 * Cp * 4 + 2 * tm * Cp * 4)
        vmem_limit = min(56 * 1024 * 1024,
                         max(32 * 1024 * 1024, int(vmem_est * 1.25) + (1 << 20)))

        cost = pl.CostEstimate(
            flops=flops,
            transcendentals=0,
            bytes_accessed=(xp.size + w1p.size + w2p.size) * 2
            + (b1p.size + b2p.size) * 4
            + Bp * Cp * 4,
        )

        out_padded = pl.pallas_call(
            class_block_kernel_fused,
            out_shape=jax.ShapeDtypeStruct((Bp, Cp), jnp.float32),
            grid_spec=pltpu.PrefetchScalarGridSpec(
                num_scalar_prefetch=0,
                grid=grid,
                in_specs=[
                    pl.BlockSpec((tm, Dp), lambda i: (i, 0)),   # x batch tile
                    pl.BlockSpec((Dp, Hp), lambda i: (0, 0)),   # w1 resident
                    pl.BlockSpec((1, Hp), lambda i: (0, 0)),    # b1 resident
                    pl.BlockSpec((Hp, Cp), lambda i: (0, 0)),   # w2 resident
                    pl.BlockSpec((1, Cp), lambda i: (0, 0)),    # b2 resident
                ],
                out_specs=pl.BlockSpec((tm, Cp), lambda i: (i, 0)),
            ),
            compiler_params=pltpu.CompilerParams(
                dimension_semantics=("parallel",),
                vmem_limit_bytes=vmem_limit,
            ),
            cost_estimate=cost,
        )(xp, w1p, b1p, w2p, b2p)

    else:
        # -------- Very large class count: tile the class dim (tn=256) --------
        tn = 256
        Cp = _round_up(C, tn)
        xp = _pad2d(x, Bp, Dp).astype(jnp.bfloat16)
        w1p = _pad2d(w1_eff, Dp, Hp).astype(jnp.bfloat16)
        b1p = _pad2d(b1_eff, 1, Hp).astype(jnp.float32)
        w2p = _pad2d(params["w2"], Hp, Cp).astype(jnp.bfloat16)
        b2p = _pad2d(params["b2"], 1, Cp).astype(jnp.float32)

        grid = (Bp // tm, Cp // tn)
        n_btiles = grid[0]

        vmem_est = (2 * tm * Dp * 2 + 2 * Dp * Hp * 2 + 2 * Hp * 4
                    + 2 * Hp * tn * 2 + 2 * tn * 4 + 2 * tm * tn * 4
                    + tm * Hp * 4)  # f32 hidden-activation scratch
        vmem_limit = min(56 * 1024 * 1024,
                         max(32 * 1024 * 1024, int(vmem_est * 1.25) + (1 << 20)))

        cost = pl.CostEstimate(
            flops=flops,
            transcendentals=0,
            bytes_accessed=(xp.size + w1p.size) * 2
            + w2p.size * 2 * n_btiles           # w2 re-streamed once per batch tile
            + b1p.size * 4 + b2p.size * 4 * n_btiles
            + Bp * Cp * 4,
        )

        out_padded = pl.pallas_call(
            class_block_kernel_tiled,
            out_shape=jax.ShapeDtypeStruct((Bp, Cp), jnp.float32),
            grid_spec=pltpu.PrefetchScalarGridSpec(
                num_scalar_prefetch=0,
                grid=grid,
                in_specs=[
                    pl.BlockSpec((tm, Dp), lambda i, j: (i, 0)),   # x batch tile
                    pl.BlockSpec((Dp, Hp), lambda i, j: (0, 0)),   # w1 resident
                    pl.BlockSpec((1, Hp), lambda i, j: (0, 0)),    # b1 resident
                    pl.BlockSpec((Hp, tn), lambda i, j: (0, j)),   # w2 class tile
                    pl.BlockSpec((1, tn), lambda i, j: (0, j)),    # b2 class tile
                ],
                out_specs=pl.BlockSpec((tm, tn), lambda i, j: (i, j)),
                scratch_shapes=[pltpu.VMEM((tm, Hp), jnp.float32)],
            ),
            compiler_params=pltpu.CompilerParams(
                # Class axis must stay innermost + "arbitrary": the h_ref scratch
                # is written at j==0 and read for j>0 on the same core.
                dimension_semantics=("parallel", "arbitrary"),
                vmem_limit_bytes=vmem_limit,
            ),
            cost_estimate=cost,
        )(xp, w1p, b1p, w2p, b2p)

    return out_padded[:B, :C]


# ----------------------------------------------------------------------------
# Params / reference
# ----------------------------------------------------------------------------
def init_class_block_params(key, input_dim, class_num, num_bottleneck):
    """Deterministic init matching weights_init_kaiming / weights_init_classifier."""
    k1, k2, k3 = jax.random.split(key, 3)

    # add_block Linear: kaiming_normal_(a=0, mode='fan_out') -> std = sqrt(2/fan_out)
    std1 = (2.0 / num_bottleneck) ** 0.5
    w1 = std1 * jax.random.normal(k1, (input_dim, num_bottleneck), jnp.float32)
    b1 = jnp.zeros((1, num_bottleneck), jnp.float32)

    # BatchNorm1d: weight ~ N(1, 0.02), bias = 0, running stats = (0, 1)
    gamma = 1.0 + 0.02 * jax.random.normal(k2, (1, num_bottleneck), jnp.float32)
    beta = jnp.zeros((1, num_bottleneck), jnp.float32)
    running_mean = jnp.zeros((1, num_bottleneck), jnp.float32)
    running_var = jnp.ones((1, num_bottleneck), jnp.float32)

    # classifier Linear: normal(std=0.001), bias = 0
    w2 = 0.001 * jax.random.normal(k3, (num_bottleneck, class_num), jnp.float32)
    b2 = jnp.zeros((1, class_num), jnp.float32)

    return dict(w1=w1, b1=b1, gamma=gamma, beta=beta,
                running_mean=running_mean, running_var=running_var,
                w2=w2, b2=b2)


def class_block_reference(x, p):
    """Plain-JAX f32 reference of the same (eval-mode) forward."""
    h = x @ p["w1"] + p["b1"]
    h = (h - p["running_mean"]) * jax.lax.rsqrt(p["running_var"] + BN_EPS) \
        * p["gamma"] + p["beta"]
    h = jnp.where(h > 0, h, LEAKY_SLOPE * h)
    return h @ p["w2"] + p["b2"]


if __name__ == "__main__":
    key = jax.random.PRNGKey(0)
    k_x, k_p = jax.random.split(key)

    batch, input_dim, num_bottleneck, class_num = 8, 32, 64, 16
    x = jax.random.normal(k_x, (batch, input_dim), jnp.float32)
    params = init_class_block_params(k_p, input_dim, class_num, num_bottleneck)

    out = class_block_forward(x, params)
    out = jax.block_until_ready(out)

    ref = class_block_reference(x, params)
    assert out.shape == (batch, class_num)
    # bf16 matmul operands -> slightly looser tolerance than pure f32.
    assert jnp.allclose(out, ref, atol=2e-3, rtol=5e-2), \
        f"max abs err {jnp.max(jnp.abs(out - ref))}"

    print("KERNEL_OK")
</pallas_src>

<mosaic_0001>
module attributes {stable_mosaic.version = 11 : i64} {
  func.func @class_block_kernel_fused(%arg0: i32, %arg1: memref<8x128xbf16, #tpu.memory_space<vmem>>, %arg2: memref<128x128xbf16, #tpu.memory_space<vmem>>, %arg3: memref<1x128xf32, #tpu.memory_space<vmem>>, %arg4: memref<128x128xbf16, #tpu.memory_space<vmem>>, %arg5: memref<1x128xf32, #tpu.memory_space<vmem>>, %arg6: memref<8x128xf32, #tpu.memory_space<vmem>>) attributes {dimension_semantics = [#tpu.dimension_semantics<parallel>], iteration_bounds = array<i64: 1>, scalar_prefetch = 0 : i64, scratch_operands = 0 : i64, tpu.core_type = #tpu.core_type<tc>, window_params = [{transform_indices = @transform_0, window_bounds = array<i64: 8, 128>}, {pipeline_mode = #tpu.pipeline_mode<synchronous>, transform_indices = @transform_1, window_bounds = array<i64: 128, 128>}, {pipeline_mode = #tpu.pipeline_mode<synchronous>, transform_indices = @transform_2, window_bounds = array<i64: 1, 128>}, {pipeline_mode = #tpu.pipeline_mode<synchronous>, transform_indices = @transform_3, window_bounds = array<i64: 128, 128>}, {pipeline_mode = #tpu.pipeline_mode<synchronous>, transform_indices = @transform_4, window_bounds = array<i64: 1, 128>}, {transform_indices = @transform_5, window_bounds = array<i64: 8, 128>}]} {
    %c0 = arith.constant 0 : index
    %c0_0 = arith.constant 0 : index
    %0 = vector.load %arg1[%c0, %c0_0] : memref<8x128xbf16, #tpu.memory_space<vmem>>, vector<8x128xbf16>
    %c0_1 = arith.constant 0 : index
    %c0_2 = arith.constant 0 : index
    %1 = vector.load %arg2[%c0_1, %c0_2] : memref<128x128xbf16, #tpu.memory_space<vmem>>, vector<128x128xbf16>
    %cst = arith.constant dense<0.000000e+00> : vector<8x128xf32>
    %2 = tpu.matmul %0, %1, %cst {dimension_numbers = #tpu.dot_dimension_numbers<[1], [0], [0], [1], [0, 0, 1, 1], [], []>} : vector<8x128xbf16>, vector<128x128xbf16>, vector<8x128xf32> -> vector<8x128xf32>
    %c0_3 = arith.constant 0 : index
    %c0_4 = arith.constant 0 : index
    %3 = vector.load %arg3[%c0_3, %c0_4] : memref<1x128xf32, #tpu.memory_space<vmem>>, vector<1x128xf32>
    %4 = vector.broadcast %3 : vector<1x128xf32> to vector<8x128xf32>
    %5 = arith.addf %2, %4 : vector<8x128xf32>
    %cst_5 = arith.constant 1.000000e-01 : f32
    %6 = vector.broadcast %cst_5 : f32 to vector<8x128xf32>
    %7 = arith.mulf %6, %5 : vector<8x128xf32>
    %8 = arith.maximumf %5, %7 : vector<8x128xf32>
    %9 = arith.truncf %8 : vector<8x128xf32> to vector<8x128xbf16>
    %c0_6 = arith.constant 0 : index
    %c0_7 = arith.constant 0 : index
    %10 = vector.load %arg4[%c0_6, %c0_7] : memref<128x128xbf16, #tpu.memory_space<vmem>>, vector<128x128xbf16>
    %cst_8 = arith.constant dense<0.000000e+00> : vector<8x128xf32>
    %11 = tpu.matmul %9, %10, %cst_8 {dimension_numbers = #tpu.dot_dimension_numbers<[1], [0], [0], [1], [0, 0, 1, 1], [], []>} : vector<8x128xbf16>, vector<128x128xbf16>, vector<8x128xf32> -> vector<8x128xf32>
    %c0_9 = arith.constant 0 : index
    %c0_10 = arith.constant 0 : index
    %12 = vector.load %arg5[%c0_9, %c0_10] : memref<1x128xf32, #tpu.memory_space<vmem>>, vector<1x128xf32>
    %13 = vector.broadcast %12 : vector<1x128xf32> to vector<8x128xf32>
    %14 = arith.addf %11, %13 : vector<8x128xf32>
    %c0_11 = arith.constant 0 : index
    %c0_12 = arith.constant 0 : index
    %15 = vector.load %arg6[%c0_11, %c0_12] : memref<8x128xf32, #tpu.memory_space<vmem>>, vector<8x128xf32>
    tpu.vector_store %arg6[%c0_11, %c0_12], %14 {strides = array<i32>} : memref<8x128xf32, #tpu.memory_space<vmem>>, vector<8x128xf32>,
    return
  }
  func.func @transform_0(%arg0: i32) -> (i32, i32) {
    %c0_i32 = arith.constant 0 : i32
    %c0_i32_0 = arith.constant 0 : i32
    return %arg0, %c0_i32 : i32, i32
  }
  func.func @transform_1(%arg0: i32) -> (i32, i32) {
    %c0_i32 = arith.constant 0 : i32
    %c0_i32_0 = arith.constant 0 : i32
    %c0_i32_1 = arith.constant 0 : i32
    return %c0_i32, %c0_i32_0 : i32, i32
  }
  func.func @transform_2(%arg0: i32) -> (i32, i32) {
    %c0_i32 = arith.constant 0 : i32
    %c0_i32_0 = arith.constant 0 : i32
    %c0_i32_1 = arith.constant 0 : i32
    return %c0_i32, %c0_i32_0 : i32, i32
  }
  func.func @transform_3(%arg0: i32) -> (i32, i32) {
    %c0_i32 = arith.constant 0 : i32
    %c0_i32_0 = arith.constant 0 : i32
    %c0_i32_1 = arith.constant 0 : i32
    return %c0_i32, %c0_i32_0 : i32, i32
  }
  func.func @transform_4(%arg0: i32) -> (i32, i32) {
    %c0_i32 = arith.constant 0 : i32
    %c0_i32_0 = arith.constant 0 : i32
    %c0_i32_1 = arith.constant 0 : i32
    return %c0_i32, %c0_i32_0 : i32, i32
  }
  func.func @transform_5(%arg0: i32) -> (i32, i32) {
    %c0_i32 = arith.constant 0 : i32
    %c0_i32_0 = arith.constant 0 : i32
    return %arg0, %c0_i32 : i32, i32
  }
}

</mosaic_0001>

<llo_original>
// kernel: class_block_forward.1
$region0: #{class_block_forward.1}
  #allocation0 [shape = 'u32[]', space=smem, size = 0x4, offset = 0x4, fixed_abs, tag = 'smem constant byte address 0x4 - core index']
  #allocation1 [shape = 'u32[144,128]{1,0:T(1,128)}', space=vmem, size = 0x12000, scoped, tag = 'internal scratch']
  %s0 = inlined_call_operand.vmem [shape: bf16[8,128], index: 0, kind: input, shape index: {}]
  %s1 = inlined_call_operand.vmem [shape: bf16[128,128], index: 1, kind: input, shape index: {}]
  %s2 = inlined_call_operand.vmem [shape: f32[1,128], index: 2, kind: input, shape index: {}]
  %s3 = inlined_call_operand.vmem [shape: bf16[128,128], index: 3, kind: input, shape index: {}]
  %s4 = inlined_call_operand.vmem [shape: f32[1,128], index: 4, kind: input, shape index: {}]
  %s5 = inlined_call_operand.hbm [shape: f32[8,128], index: 5, kind: output, shape index: {}]
  %s6 = sld [smem:[#allocation0]]
  $region30: #{class_block_forward.1} parent=0
    _
  %s8 = ssub.s32 1, %s6
  %s9 = scalar_select 0, %s8, %s6
  $region1: #{class_block_forward.1} parent=0
    #allocation2 [shape = 'u8[4096]{0}', space=vmem, size = 0x1000, scoped, tag = 'output window, operand 0, single buffered']
    #allocation3 [shape = 's32[1]{0}', space=sflag, size = 0x4, scoped, tag = 'scoped memory for class_block_forward.1']
    %10 = vsyncpa [#allocation3], 0
    // Predicated region
    $region2: #{class_block_forward.1} parent=1 // pred_check
      _
    $region3: #{class_block_forward.1} parent=1 // pred_check_branch
      %12 = sbr.rel (0) target = $region5
    $region4: #{class_block_forward.1} parent=1 // pred_region
      _
    $region5: #{class_block_forward.1} parent=1 // pred_fallthru
      _
    // Predicated region
    $region6: #{class_block_forward.1} parent=1 // pred_check
      _
    $region7: #{class_block_forward.1} parent=1 // pred_check_branch
      %14 = sbr.rel (0) target = $region9
    $region8: #{class_block_forward.1} parent=1 // pred_region
      _
    $region9: #{class_block_forward.1} parent=1 // pred_fallthru
      _
    // Predicated region
    $region10: #{class_block_forward.1} parent=1 // pred_check
      _
    $region11: #{class_block_forward.1} parent=1 // pred_check_branch
      %16 = sbr.rel (0) target = $region13
    $region12: #{class_block_forward.1} parent=1 // pred_region
      _
    $region13: #{class_block_forward.1} parent=1 // pred_fallthru
      _
    // Predicated region
    $region14: #{class_block_forward.1} parent=1 // pred_check
      _
    $region15: #{class_block_forward.1} parent=1 // pred_check_branch
      %18 = sbr.rel (0) target = $region17
    $region16: #{class_block_forward.1} parent=1 // pred_region
      _
    $region17: #{class_block_forward.1} parent=1 // pred_fallthru
      _
    // Predicated region
    $region18: #{class_block_forward.1} parent=1 // pred_check
      _
    $region19: #{class_block_forward.1} parent=1 // pred_check_branch
      %20 = sbr.rel (0) target = $region21
    $region20: #{class_block_forward.1} parent=1 // pred_region
      _
    $region21: #{class_block_forward.1} parent=1 // pred_fallthru
      _
    %v22 = vld [vmem:[%s0] sm:$0xf]
    %v23 = vld [vmem:[%s1] sm:$0xf]
    %v24 = vld [vmem:[%s1 + $0x4] sm:$0xf]
    %v25 = vld [vmem:[%s1 + $0x8] sm:$0xf]
    %v26 = vld [vmem:[%s1 + $0xc] sm:$0xf]
    %v27 = vld [vmem:[%s1 + $0x10] sm:$0xf]
    %v28 = vld [vmem:[%s1 + $0x14] sm:$0xf]
    %v29 = vld [vmem:[%s1 + $0x18] sm:$0xf]
    %v30 = vld [vmem:[%s1 + $0x1c] sm:$0xf]
    %v31 = vld [vmem:[%s1 + $0x20] sm:$0xf]
    %v32 = vld [vmem:[%s1 + $0x24] sm:$0xf]
    %v33 = vld [vmem:[%s1 + $0x28] sm:$0xf]
    %v34 = vld [vmem:[%s1 + $0x2c] sm:$0xf]
    %v35 = vld [vmem:[%s1 + $0x30] sm:$0xf]
    %v36 = vld [vmem:[%s1 + $0x34] sm:$0xf]
    %v37 = vld [vmem:[%s1 + $0x38] sm:$0xf]
    %v38 = vld [vmem:[%s1 + $0x3c] sm:$0xf]
    %v39 = vld [vmem:[%s2] sm:$0x1]
    %v41 = vlaneseq
    %v42 = vshrl.u32 %v41, 7
    %v43 = vsub.s32 0, %v42
    %v44 = vrot.slane %v39, %v43
    %v62 = vunpack.c.l.b16 %v23
    %v63 = vunpack.c.l.b16 %v24
    %v64 = vunpack.c.l.b16 %v25
    %v65 = vunpack.c.l.b16 %v26
    %v66 = vunpack.c.l.b16 %v27
    %v67 = vunpack.c.l.b16 %v28
    %v68 = vunpack.c.l.b16 %v29
    %v69 = vunpack.c.l.b16 %v30
    %v70 = vunpack.c.l.b16 %v31
    %v71 = vunpack.c.l.b16 %v32
    %v72 = vunpack.c.l.b16 %v33
    %v73 = vunpack.c.l.b16 %v34
    %v74 = vunpack.c.l.b16 %v35
    %v75 = vunpack.c.l.b16 %v36
    %v76 = vunpack.c.l.b16 %v37
    %v77 = vunpack.c.l.b16 %v38
    %v78 = vpack.c.b16 %v63, %v62
    %v79 = vpack.c.b16 %v65, %v64
    %v80 = vpack.c.b16 %v67, %v66
    %v81 = vpack.c.b16 %v69, %v68
    %v82 = vpack.c.b16 %v71, %v70
    %v83 = vpack.c.b16 %v73, %v72
    %v84 = vpack.c.b16 %v75, %v74
    %v85 = vpack.c.b16 %v77, %v76
    %94 = vmatprep.subr.bf16.mxu0 0
    %95 = vmatpush1.bf16.msra.mxu0 %v85
    %96 = vmatprep.subr.bf16.mxu0 0
    %97 = vmatpush1.bf16.msra.mxu0 %v84
    %98 = vmatprep.subr.bf16.mxu0 0
    %99 = vmatpush1.bf16.msra.mxu0 %v83
    %100 = vmatprep.subr.bf16.mxu0 0
    %101 = vmatpush1.bf16.msra.mxu0 %v82
    %102 = vmatprep.subr.bf16.mxu0 0
    %103 = vmatpush1.bf16.msra.mxu0 %v81
    %104 = vmatprep.subr.bf16.mxu0 0
    %105 = vmatpush1.bf16.msra.mxu0 %v80
    %106 = vmatprep.subr.bf16.mxu0 0
    %107 = vmatpush1.bf16.msra.mxu0 %v79
    %108 = vmatprep.subr.bf16.mxu0 0
    %109 = vmatpush1.bf16.msra.mxu0 %v78
    %110 = vmatprep.subr.bf16.mxu0 0
    %111 = vmatpush2.bf16.msra.mxu0 0
    %112 = vmatprep.subr.bf16.mxu0 0
    %113 = vmatpush2.bf16.msra.mxu0 0
    %114 = vmatprep.subr.bf16.mxu0 0
    %115 = vmatpush2.bf16.msra.mxu0 0
    %116 = vmatprep.subr.bf16.mxu0 0
    %117 = vmatpush2.bf16.msra.mxu0 0
    %118 = vmatprep.subr.bf16.mxu0 0
    %119 = vmatpush2.bf16.msra.mxu0 0
    %120 = vmatprep.subr.bf16.mxu0 0
    %121 = vmatpush2.bf16.msra.mxu0 0
    %122 = vmatprep.subr.bf16.mxu0 0
    %123 = vmatpush2.bf16.msra.mxu0 0
    %124 = vmatprep.subr.bf16.mxu0 0
    %125 = vmatpush2.bf16.msra.mxu0 0
    %126 = vmatprep.mubr.bf16.mxu0 0
    %127 = vmatmul.mubr.bf16.gmra.mxu0 %v22
    %v128 = vpop.f32.mrf.mxu0
    %v129 = vadd.f32 %v44, %v128
    %v130 = vpop.f32.mrf.mxu0
    %v131 = vpop.f32.mrf.mxu0
    %v132 = vpop.f32.mrf.mxu0
    %133 = vdwg.mxu0
    %v134 = vmul.f32 %v129, 0.1
    %v135 = vmax.f32 %v129, %v134
    %v136 = vpack.c.bf16 %v135, %v135
    %v137 = vld [vmem:[%s3] sm:$0xf]
    %v138 = vld [vmem:[%s3 + $0x4] sm:$0xf]
    %v139 = vld [vmem:[%s3 + $0x8] sm:$0xf]
    %v140 = vld [vmem:[%s3 + $0xc] sm:$0xf]
    %v141 = vld [vmem:[%s3 + $0x10] sm:$0xf]
    %v142 = vld [vmem:[%s3 + $0x14] sm:$0xf]
    %v143 = vld [vmem:[%s3 + $0x18] sm:$0xf]
    %v144 = vld [vmem:[%s3 + $0x1c] sm:$0xf]
    %v145 = vld [vmem:[%s3 + $0x20] sm:$0xf]
    %v146 = vld [vmem:[%s3 + $0x24] sm:$0xf]
    %v147 = vld [vmem:[%s3 + $0x28] sm:$0xf]
    %v148 = vld [vmem:[%s3 + $0x2c] sm:$0xf]
    %v149 = vld [vmem:[%s3 + $0x30] sm:$0xf]
    %v150 = vld [vmem:[%s3 + $0x34] sm:$0xf]
    %v151 = vld [vmem:[%s3 + $0x38] sm:$0xf]
    %v152 = vld [vmem:[%s3 + $0x3c] sm:$0xf]
    %v153 = vld [vmem:[%s4] sm:$0x1]
    %v155 = vlaneseq
    %v156 = vshrl.u32 %v155, 7
    %v157 = vsub.s32 0, %v156
    %v158 = vrot.slane %v153, %v157
    %v176 = vunpack.c.l.b16 %v137
    %v177 = vunpack.c.l.b16 %v138
    %v178 = vunpack.c.l.b16 %v139
    %v179 = vunpack.c.l.b16 %v140
    %v180 = vunpack.c.l.b16 %v141
    %v181 = vunpack.c.l.b16 %v142
    %v182 = vunpack.c.l.b16 %v143
    %v183 = vunpack.c.l.b16 %v144
    %v184 = vunpack.c.l.b16 %v145
    %v185 = vunpack.c.l.b16 %v146
    %v186 = vunpack.c.l.b16 %v147
    %v187 = vunpack.c.l.b16 %v148
    %v188 = vunpack.c.l.b16 %v149
    %v189 = vunpack.c.l.b16 %v150
    %v190 = vunpack.c.l.b16 %v151
    %v191 = vunpack.c.l.b16 %v152
    %v192 = vpack.c.b16 %v177, %v176
    %v193 = vpack.c.b16 %v179, %v178
    %v194 = vpack.c.b16 %v181, %v180
    %v195 = vpack.c.b16 %v183, %v182
    %v196 = vpack.c.b16 %v185, %v184
    %v197 = vpack.c.b16 %v187, %v186
    %v198 = vpack.c.b16 %v189, %v188
    %v199 = vpack.c.b16 %v191, %v190
    %208 = vmatprep.subr.bf16.mxu0 0
    %209 = vmatpush1.bf16.msra.mxu0 %v199
    %210 = vmatprep.subr.bf16.mxu0 0
    %211 = vmatpush1.bf16.msra.mxu0 %v198
    %212 = vmatprep.subr.bf16.mxu0 0
    %213 = vmatpush1.bf16.msra.mxu0 %v197
    %214 = vmatprep.subr.bf16.mxu0 0
    %215 = vmatpush1.bf16.msra.mxu0 %v196
    %216 = vmatprep.subr.bf16.mxu0 0
    %217 = vmatpush1.bf16.msra.mxu0 %v195
    %218 = vmatprep.subr.bf16.mxu0 0
    %219 = vmatpush1.bf16.msra.mxu0 %v194
    %220 = vmatprep.subr.bf16.mxu0 0
    %221 = vmatpush1.bf16.msra.mxu0 %v193
    %222 = vmatprep.subr.bf16.mxu0 0
    %223 = vmatpush1.bf16.msra.mxu0 %v192
    %224 = vmatprep.subr.bf16.mxu0 0
    %225 = vmatpush2.bf16.msra.mxu0 0
    %226 = vmatprep.subr.bf16.mxu0 0
    %227 = vmatpush2.bf16.msra.mxu0 0
    %228 = vmatprep.subr.bf16.mxu0 0
    %229 = vmatpush2.bf16.msra.mxu0 0
    %230 = vmatprep.subr.bf16.mxu0 0
    %231 = vmatpush2.bf16.msra.mxu0 0
    %232 = vmatprep.subr.bf16.mxu0 0
    %233 = vmatpush2.bf16.msra.mxu0 0
    %234 = vmatprep.subr.bf16.mxu0 0
    %235 = vmatpush2.bf16.msra.mxu0 0
    %236 = vmatprep.subr.bf16.mxu0 0
    %237 = vmatpush2.bf16.msra.mxu0 0
    %238 = vmatprep.subr.bf16.mxu0 0
    %239 = vmatpush2.bf16.msra.mxu0 0
    %240 = vmatprep.mubr.bf16.mxu0 0
    %241 = vmatmul.mubr.bf16.gmra.mxu0 %v136
    %v242 = vpop.f32.mrf.mxu0
    %v243 = vadd.f32 %v158, %v242
    %v244 = vpop.f32.mrf.mxu0
    %v245 = vpop.f32.mrf.mxu0
    %v246 = vpop.f32.mrf.mxu0
    %247 = vdwg.mxu0
    %248 = vst [vmem:[#allocation2] sm:$0xff] %v243
    // Predicated region
    $region22: #{class_block_forward.1} parent=1 // pred_check
      _
    $region23: #{class_block_forward.1} parent=1 // pred_check_branch
      %250 = sbr.rel (0) target = $region25
    $region24: #{class_block_forward.1} parent=1 // pred_region
      %s252 = ssub.s32 128, 128
      %253 = vsyncadd [#allocation3], %s252
      %s255 = sshll.u32 [#allocation2], 4
      %s256 = int_to_ptr.vmem [resolvable:$true] %s255
      %258 = dma.vmem_to_hbm [thread:$0]  %s256, 128, %s5, [#allocation3]
    $region25: #{class_block_forward.1} parent=1 // pred_fallthru
      _
    // Predicated region
    $region26: #{class_block_forward.1} parent=1 // pred_check
      _
    $region27: #{class_block_forward.1} parent=1 // pred_check_branch
      %260 = sbr.rel (0) target = $region29
    $region28: #{class_block_forward.1} parent=1 // pred_region
      %261 = dma.done [#allocation3], 128
    $region29: #{class_block_forward.1} parent=1 // pred_fallthru
      _
    %262 = vsyncpa [#allocation3], 1

</llo_original>
